<compile_context>
chip_gen: v7x
topology: tpu7x:2x2x1
jax: 0.10.0
libtpu: 0.0.40
codegen_flags: <defaults>
</compile_context>

<pallas_src>
import functools

import jax
import jax.numpy as jnp
from jax import lax
from jax.experimental import pallas as pl
from jax.experimental.pallas import tpu as pltpu

_LANES = 128


def _round_up(x, m):
    return ((x + m - 1) // m) * m


def _focal_loss_kernel(logits_ref, tgt_ref, out_ref, *, gamma):
    """One grid step: tile_n rows of logits -> tile_n unweighted focal losses.

    logits_ref: (tile_n, C)  source dtype (cast to f32 here)
    tgt_ref:    (tile_n, 1)  int32 class index per row
    out_ref:    (tile_n, 1)  f32 per-sample (1-pt)^gamma * ce  (class weight
                             is applied in the wrapper)
    """
    x = logits_ref[...].astype(jnp.float32)                # (TN, C)
    tn, c = x.shape
    tgt = tgt_ref[...]                                      # (TN, 1) int32

    # Numerically stable log-softmax pieces (row-wise, classes on lanes).
    m = jnp.max(x, axis=-1, keepdims=True)                  # (TN, 1)   XLU
    xc = x - m                                              # (TN, C)   VPU
    ex = jnp.exp(xc)                                        # (TN, C)   EUP (main cost)
    sum_ex = jnp.sum(ex, axis=-1, keepdims=True)            # (TN, 1)   XLU
    lse = jnp.log(sum_ex)                                   # (TN, 1)   EUP

    # Target logit via fused select + reduce (no f32 one-hot, no MXU).
    cls = lax.broadcasted_iota(jnp.int32, (tn, c), 1)       # (TN, C)
    xc_t = jnp.sum(jnp.where(cls == tgt, xc, 0.0),
                   axis=-1, keepdims=True)                  # (TN, 1) = x_t - m

    ce = lse - xc_t                                         # unweighted CE
    pt = jnp.exp(-ce)                                       # softmax prob of target
    omp = jnp.maximum(1.0 - pt, 0.0)                        # clamp ulp overshoot

    g = float(gamma)
    if g == round(g) and 0.0 <= g <= 8.0:
        # Fast path: pure VPU multiplies (handles the default gamma=2, and 0).
        mod = jnp.ones_like(omp)
        for _ in range(int(round(g))):
            mod = mod * omp
    else:
        # General gamma via exp(g*log(.)) with an explicit guard at omp == 0.
        safe = jnp.where(omp > 0.0, omp, 1.0)
        mod = jnp.where(omp > 0.0, jnp.exp(g * jnp.log(safe)), 0.0)

    # Natural-layout store: no broadcast, no transpose, no relayout.
    out_ref[...] = mod * ce                                 # (TN, 1)


def _tpu_vmem_physical_bytes():
    """Physical VMEM per TensorCore; conservative (v7x) fallback off-device."""
    try:
        info = pltpu.get_tpu_info()
        v = int(getattr(info, "vmem_capacity_bytes", 0))
        if v > 0:
            return v
    except Exception:
        pass
    return 64 << 20


def _auto_tile_n(n_rows, n_classes, itemsize, budget_bytes):
    """Pick tile_n so the accounted per-step VMEM stays inside budget_bytes."""
    c_pad = _round_up(n_classes, _LANES)
    per_row = (
        2 * c_pad * itemsize   # double-buffered logits blocks (lane-padded to 128)
        + 2 * 512              # (tile_n, 1) int32 target blocks, (8,128)-tiled
        + 2 * 512              # (tile_n, 1) f32 output blocks, (8,128)-tiled
        + 4 * c_pad * 4        # ~4 live f32 (tile_n, c_pad) temporaries
    )
    tile = max(8, budget_bytes // per_row)
    if tile >= 128:
        tile = (tile // 128) * 128
        tile = min(tile, _round_up(max(n_rows, 1), 128))
    else:
        tile = max(8, (tile // 8) * 8)
    return int(min(tile, 8192))


def focal_loss(predicted, target, weight=None, gamma=2.0, reduction='mean',
               tile_n=None):
    """Pallas TPU focal loss.

    predicted: (N, C) float logits (any float dtype; DMA'd in source dtype),
    target:    (N,)   int class indices,
    weight:    optional (C,) per-class weights (applied in the wrapper).
    """
    predicted = jnp.asarray(predicted)
    N, C = predicted.shape
    tgt = jnp.asarray(target, jnp.int32)

    itemsize = jnp.dtype(predicted.dtype).itemsize
    phys_vmem = _tpu_vmem_physical_bytes()
    # Keep accounted usage well inside physical VMEM on every generation
    # (v5e/v6e 128 MiB, v7x 64 MiB per TC) and leave Mosaic scratch headroom.
    budget = max(6 << 20, min(phys_vmem // 6, 16 << 20))
    if tile_n is None:
        tile_n = _auto_tile_n(N, C, itemsize, budget)
    assert tile_n % 8 == 0, "tile_n must be a multiple of 8"
    vmem_limit = int(min(32 << 20, max(phys_vmem // 2, 16 << 20)))

    num_tiles = pl.cdiv(N, tile_n)
    n_pad = num_tiles * tile_n

    # Only the tiny side arrays are padded; the logits stay unpadded in HBM and
    # the tail block is handled by Pallas' boundary clamping.
    tgt_col = jnp.pad(tgt, (0, n_pad - N)).reshape(n_pad, 1)

    kernel = functools.partial(_focal_loss_kernel, gamma=float(gamma))
    per_unw = pl.pallas_call(
        kernel,
        out_shape=jax.ShapeDtypeStruct((n_pad, 1), jnp.float32),
        grid_spec=pltpu.PrefetchScalarGridSpec(
            num_scalar_prefetch=0,
            grid=(num_tiles,),
            in_specs=[
                pl.BlockSpec((tile_n, C), lambda i: (i, 0)),   # logits tile
                pl.BlockSpec((tile_n, 1), lambda i: (i, 0)),   # target indices
            ],
            out_specs=pl.BlockSpec((tile_n, 1), lambda i: (i, 0)),
        ),
        compiler_params=pltpu.CompilerParams(
            # No cross-iteration state -> rows shard across TCs where available.
            dimension_semantics=("parallel",),
            vmem_limit_bytes=vmem_limit,
        ),
    )(predicted, tgt_col)

    per = per_unw.reshape(n_pad)[:N]
    if weight is not None:
        per = per * jnp.asarray(weight, jnp.float32)[tgt]   # tiny (C,) gather
    if reduction == 'none':
        return per
    elif reduction == 'mean':
        return jnp.mean(per)
    else:  # 'sum'
        return jnp.sum(per)


def _ref_focal(predicted, target, weight=None, gamma=2.0, reduction='mean'):
    """Pure-JAX reference matching the PyTorch module."""
    x = jnp.asarray(predicted).astype(jnp.float32)
    logp = jax.nn.log_softmax(x, axis=-1)
    ce = -jnp.take_along_axis(logp, target[:, None], axis=-1)[:, 0]
    w = jnp.ones_like(ce) if weight is None else jnp.asarray(weight, jnp.float32)[target]
    pt = jnp.exp(-ce)
    focal = (1.0 - pt) ** gamma * (w * ce)
    if reduction == 'none':
        return focal
    elif reduction == 'mean':
        return jnp.mean(focal)
    return jnp.sum(focal)


if __name__ == "__main__":
    key = jax.random.PRNGKey(0)
    k1, k2, k3, k4 = jax.random.split(key, 4)

    # ---- Test 1: f32 logits, class weights, gamma=2, multi-tile grid ----
    N, C = 384, 32
    predicted = jax.random.normal(k1, (N, C), dtype=jnp.float32) * 2.0
    target = jax.random.randint(k2, (N,), 0, C, dtype=jnp.int32)
    weight = jnp.linspace(0.5, 1.5, C, dtype=jnp.float32)

    per_sample = focal_loss(predicted, target, weight=weight, gamma=2.0,
                            reduction='none', tile_n=128)     # grid of 3 tiles
    loss_mean = focal_loss(predicted, target, weight=weight, gamma=2.0,
                           reduction='mean', tile_n=128)
    jax.block_until_ready((per_sample, loss_mean))

    assert jnp.allclose(per_sample, _ref_focal(predicted, target, weight, 2.0, 'none'),
                        rtol=1e-5, atol=1e-5), "per-sample mismatch (f32)"
    assert jnp.allclose(loss_mean, _ref_focal(predicted, target, weight, 2.0, 'mean'),
                        rtol=1e-5, atol=1e-5), "mean mismatch (f32)"

    # ---- Test 2: odd N (tail tile, no logits pad), non-integer gamma, sum ----
    N2 = 300
    predicted2 = jax.random.normal(k3, (N2, C), dtype=jnp.float32)
    target2 = jax.random.randint(k4, (N2,), 0, C, dtype=jnp.int32)
    loss_sum = focal_loss(predicted2, target2, gamma=1.5, reduction='sum',
                          tile_n=128)                          # cdiv grid, masked tail
    jax.block_until_ready(loss_sum)
    assert jnp.allclose(loss_sum, _ref_focal(predicted2, target2, None, 1.5, 'sum'),
                        rtol=1e-4, atol=1e-4), "sum mismatch (odd N, gamma=1.5)"

    # ---- Test 3: bf16 logits path (cast to f32 inside the kernel) ----
    predicted_bf = predicted.astype(jnp.bfloat16)
    per_bf = focal_loss(predicted_bf, target, weight=weight, gamma=2.0,
                        reduction='none', tile_n=128)
    jax.block_until_ready(per_bf)
    assert jnp.allclose(per_bf, _ref_focal(predicted_bf, target, weight, 2.0, 'none'),
                        rtol=1e-3, atol=1e-3), "per-sample mismatch (bf16)"

    print("KERNEL_OK")
</pallas_src>

<mosaic_0001>
module attributes {stable_mosaic.version = 11 : i64} {
  func.func @_focal_loss_kernel(%arg0: i32, %arg1: memref<128x32xf32, #tpu.memory_space<vmem>>, %arg2: memref<128x1xi32, #tpu.memory_space<vmem>>, %arg3: memref<128x1xf32, #tpu.memory_space<vmem>>) attributes {dimension_semantics = [#tpu.dimension_semantics<parallel>], iteration_bounds = array<i64: 3>, scalar_prefetch = 0 : i64, scratch_operands = 0 : i64, tpu.core_type = #tpu.core_type<tc>, window_params = [{transform_indices = @transform_0, window_bounds = array<i64: 128, 32>}, {transform_indices = @transform_1, window_bounds = array<i64: 128, 1>}, {transform_indices = @transform_2, window_bounds = array<i64: 128, 1>}]} {
    %c0 = arith.constant 0 : index
    %c0_0 = arith.constant 0 : index
    %0 = vector.load %arg1[%c0, %c0_0] : memref<128x32xf32, #tpu.memory_space<vmem>>, vector<128x32xf32>
    %c0_1 = arith.constant 0 : index
    %c0_2 = arith.constant 0 : index
    %1 = vector.load %arg2[%c0_1, %c0_2] : memref<128x1xi32, #tpu.memory_space<vmem>>, vector<128x1xi32>
    %cst = arith.constant dense<0xFF800000> : vector<128xf32>
    %2 = vector.multi_reduction <maximumf>, %0, %cst [1] : vector<128x32xf32> to vector<128xf32>
    %3 = vector.shape_cast %2 : vector<128xf32> to vector<128x1xf32>
    %4 = vector.broadcast %3 : vector<128x1xf32> to vector<128x32xf32>
    %5 = arith.subf %0, %4 : vector<128x32xf32>
    %6 = math.exp %5 : vector<128x32xf32>
    %cst_3 = arith.constant dense<0.000000e+00> : vector<128xf32>
    %7 = vector.multi_reduction <add>, %6, %cst_3 [1] : vector<128x32xf32> to vector<128xf32>
    %8 = vector.shape_cast %7 : vector<128xf32> to vector<128x1xf32>
    %9 = math.log %8 : vector<128x1xf32>
    %10 = tpu.iota {dimensions = array<i32: 1>} : vector<128x32xi32>
    %11 = vector.broadcast %1 : vector<128x1xi32> to vector<128x32xi32>
    %12 = arith.cmpi eq, %10, %11 : vector<128x32xi32>
    %cst_4 = arith.constant 0.000000e+00 : f32
    %13 = vector.broadcast %cst_4 : f32 to vector<128x32xf32>
    %14 = arith.select %12, %5, %13 : vector<128x32xi1>, vector<128x32xf32>
    %cst_5 = arith.constant dense<0.000000e+00> : vector<128xf32>
    %15 = vector.multi_reduction <add>, %14, %cst_5 [1] : vector<128x32xf32> to vector<128xf32>
    %16 = vector.shape_cast %15 : vector<128xf32> to vector<128x1xf32>
    %17 = arith.subf %9, %16 : vector<128x1xf32>
    %cst_6 = arith.constant 0.000000e+00 : f32
    %18 = vector.broadcast %cst_6 : f32 to vector<128x1xf32>
    %19 = arith.subf %18, %17 : vector<128x1xf32>
    %20 = math.exp %19 : vector<128x1xf32>
    %cst_7 = arith.constant 1.000000e+00 : f32
    %21 = vector.broadcast %cst_7 : f32 to vector<128x1xf32>
    %22 = arith.subf %21, %20 : vector<128x1xf32>
    %cst_8 = arith.constant 0.000000e+00 : f32
    %23 = vector.broadcast %cst_8 : f32 to vector<128x1xf32>
    %24 = arith.maximumf %22, %23 : vector<128x1xf32>
    %cst_9 = arith.constant 1.000000e+00 : f32
    %25 = vector.broadcast %cst_9 : f32 to vector<128x1xf32>
    %26 = arith.mulf %25, %24 : vector<128x1xf32>
    %27 = arith.mulf %26, %24 : vector<128x1xf32>
    %28 = arith.mulf %27, %17 : vector<128x1xf32>
    %c0_10 = arith.constant 0 : index
    %c0_11 = arith.constant 0 : index
    %29 = vector.load %arg3[%c0_10, %c0_11] : memref<128x1xf32, #tpu.memory_space<vmem>>, vector<128x1xf32>
    tpu.vector_store %arg3[%c0_10, %c0_11], %28 {strides = array<i32>} : memref<128x1xf32, #tpu.memory_space<vmem>>, vector<128x1xf32>,
    return
  }
  func.func @transform_0(%arg0: i32) -> (i32, i32) {
    %c0_i32 = arith.constant 0 : i32
    %c0_i32_0 = arith.constant 0 : i32
    return %arg0, %c0_i32 : i32, i32
  }
  func.func @transform_1(%arg0: i32) -> (i32, i32) {
    %c0_i32 = arith.constant 0 : i32
    %c0_i32_0 = arith.constant 0 : i32
    return %arg0, %c0_i32 : i32, i32
  }
  func.func @transform_2(%arg0: i32) -> (i32, i32) {
    %c0_i32 = arith.constant 0 : i32
    %c0_i32_0 = arith.constant 0 : i32
    return %arg0, %c0_i32 : i32, i32
  }
}

</mosaic_0001>

<llo_original>
// kernel: tpu_custom_call.1
$region0: #{tpu_custom_call.1}
  #allocation0 [shape = 'u32[]', space=smem, size = 0x4, offset = 0x4, fixed_abs, tag = 'smem constant byte address 0x4 - core index']
  #allocation1 [shape = 'u32[144,128]{1,0:T(1,128)}', space=vmem, size = 0x12000, scoped, tag = 'internal scratch']
  %s0 = inlined_call_operand.vmem [shape: f32[384,32], index: 0, kind: input, shape index: {}]
  %s1 = inlined_call_operand.vmem [shape: s32[384,1], index: 1, kind: input, shape index: {}]
  %s2 = inlined_call_operand.vmem [shape: f32[384,1], index: 2, kind: output, shape index: {}]
  %s3 = sld [smem:[#allocation0]]
  $region41: #{tpu_custom_call.1} parent=0
    _
  %s5 = ssub.s32 1, %s3
  %s6 = scalar_select 0, %s5, %s3
  loop: start=0, step=1, limit=5
  $region2: #{tpu_custom_call.1} parent=0 // loop_pre_header
    _
  $region3: #{tpu_custom_call.1} parent=0 // loop_header
    %s8 = sphi 0, %s12
    %p9 = scmp.ge.s32.totalorder %s8, 5
    %s18 = sphi 0, %s20
    %s21 = sphi 0, %s18
    %s22 = sphi 0, %s21
    %s38 = sphi 0, %s22
    %s44 = sphi 0, %s46
    %s47 = sphi 0, %s44
    %s48 = sphi 0, %s47
    %s64 = sphi 0, %s48
    %s70 = sphi 0, %s72
    %s73 = sphi 0, %s70
    %s74 = sphi 0, %s73
    %s90 = sphi 0, %s74
  $region4: #{tpu_custom_call.1} parent=0 // loop_header_branch
    %11 = sbr.rel (%p9) target = $region8
  $region5: #{tpu_custom_call.1} parent=0 // loop_body
    %s13 = ssub.s32 %s8, 1
    %s14 = ssub.s32 %s8, 2
    %s15 = sadd.s32 %s8, 1
    %s16 = ssub.s32 %s8, %s15
    %p17 = scmp.eq.s32.totalorder %s16, 0
    %s19 = sadd.s32 %s18, 1
    %s20 = scalar_select %p17, %s18, %s19
    %p23 = pneg %p17
    %p24 = scmp.eq.s32.totalorder %s8, 2
    %p25 = por %p23, %p24
    %p26 = scmp.ne.s32.totalorder %s18, %s21
    %p27 = scmp.eq.s32.totalorder %s8, 0
    %p28 = por %p26, %p27
    %p29 = scmp.ne.s32.totalorder %s18, %s21
    %p30 = scmp.eq.s32.totalorder %s13, 2
    %p31 = por %p29, %p30
    %p32 = scmp.ne.s32.totalorder %s21, %s22
    %p33 = scmp.eq.s32.totalorder %s13, 0
    %p34 = por %p32, %p33
    %p35 = scmp.ne.s32.totalorder %s21, %s22
    %p36 = scmp.eq.s32.totalorder %s14, 2
    %p37 = por %p35, %p36
    %p39 = scmp.ne.s32.totalorder %s22, %s38
    %p40 = scmp.eq.s32.totalorder %s14, 0
    %p41 = por %p39, %p40
    %s42 = ssub.s32 %s8, %s15
    %p43 = scmp.eq.s32.totalorder %s42, 0
    %s45 = sadd.s32 %s44, 1
    %s46 = scalar_select %p43, %s44, %s45
    %p49 = pneg %p43
    %p50 = scmp.eq.s32.totalorder %s8, 2
    %p51 = por %p49, %p50
    %p52 = scmp.ne.s32.totalorder %s44, %s47
    %p53 = scmp.eq.s32.totalorder %s8, 0
    %p54 = por %p52, %p53
    %p55 = scmp.ne.s32.totalorder %s44, %s47
    %p56 = scmp.eq.s32.totalorder %s13, 2
    %p57 = por %p55, %p56
    %p58 = scmp.ne.s32.totalorder %s47, %s48
    %p59 = scmp.eq.s32.totalorder %s13, 0
    %p60 = por %p58, %p59
    %p61 = scmp.ne.s32.totalorder %s47, %s48
    %p62 = scmp.eq.s32.totalorder %s14, 2
    %p63 = por %p61, %p62
    %p65 = scmp.ne.s32.totalorder %s48, %s64
    %p66 = scmp.eq.s32.totalorder %s14, 0
    %p67 = por %p65, %p66
    %s68 = ssub.s32 %s8, %s15
    %p69 = scmp.eq.s32.totalorder %s68, 0
    %s71 = sadd.s32 %s70, 1
    %s72 = scalar_select %p69, %s70, %s71
    %p75 = pneg %p69
    %p76 = scmp.eq.s32.totalorder %s8, 2
    %p77 = por %p75, %p76
    %p78 = scmp.ne.s32.totalorder %s70, %s73
    %p79 = scmp.eq.s32.totalorder %s8, 0
    %p80 = por %p78, %p79
    %p81 = scmp.ne.s32.totalorder %s70, %s73
    %p82 = scmp.eq.s32.totalorder %s13, 2
    %p83 = por %p81, %p82
    %p84 = scmp.ne.s32.totalorder %s73, %s74
    %p85 = scmp.eq.s32.totalorder %s13, 0
    %p86 = por %p84, %p85
    %p87 = scmp.ne.s32.totalorder %s73, %s74
    %p88 = scmp.eq.s32.totalorder %s14, 2
    %p89 = por %p87, %p88
    %p91 = scmp.ne.s32.totalorder %s74, %s90
    %p92 = scmp.eq.s32.totalorder %s14, 0
    %p93 = por %p91, %p92
    %p94 = scmp.le.s32.totalorder 1, %s8
    %p95 = scmp.lt.s32.totalorder %s8, 4
    %p96 = pnand %p94, %p95
    %p97 = pneg %p96
    // Predicated region
    $region9: #{tpu_custom_call.1} parent=5 // pred_check
      _
    $region10: #{tpu_custom_call.1} parent=5 // pred_check_branch
      %99 = sbr.rel (%p96) target = $region12
    $region11: #{tpu_custom_call.1} parent=5 // pred_region
      %s100 = ssub.s32 %s8, 1
    $region12: #{tpu_custom_call.1} parent=5 // pred_fallthru
      _
    %p101 = scmp.lt.s32.totalorder %s8, 3
    // Predicated region
    $region13: #{tpu_custom_call.1} parent=5 // pred_check
      %p102 = pneg %p101
    $region14: #{tpu_custom_call.1} parent=5 // pred_check_branch
      %104 = sbr.rel (%p102) target = $region16
    $region15: #{tpu_custom_call.1} parent=5 // pred_region
      // Predicated region
      $region17: #{tpu_custom_call.1} parent=15 // pred_check
        %p105 = pneg %p28
      $region18: #{tpu_custom_call.1} parent=15 // pred_check_branch
        %107 = sbr.rel (%p105) target = $region20
      $region19: #{tpu_custom_call.1} parent=15 // pred_region
        %s108 = smul.u32 16, %s8
        %p109 = scmp.lt.s32.totalorder %s108, 47
        %s110 = scalar_select %p109, %s108, 47
        %s111 = smul.addr %s110, 8
        %s112 = scalar_lea.vmem %s0, %s111
        %s113 = smul.u32 16, %s8
      $region20: #{tpu_custom_call.1} parent=15 // pred_fallthru
        _
      // Predicated region
      $region21: #{tpu_custom_call.1} parent=15 // pred_check
        %p114 = pneg %p54
      $region22: #{tpu_custom_call.1} parent=15 // pred_check_branch
        %116 = sbr.rel (%p114) target = $region24
      $region23: #{tpu_custom_call.1} parent=15 // pred_region
        %s117 = smul.u32 16, %s8
        %p118 = scmp.lt.s32.totalorder %s117, 47
        %s119 = scalar_select %p118, %s117, 47
        %s120 = smul.addr %s119, 8
        %s121 = scalar_lea.vmem %s1, %s120
        %s122 = smul.u32 16, %s8
      $region24: #{tpu_custom_call.1} parent=15 // pred_fallthru
        _
    $region16: #{tpu_custom_call.1} parent=5 // pred_fallthru
      _
    %p123 = scmp.le.s32.totalorder 1, %s8
    %p124 = scmp.lt.s32.totalorder %s8, 4
    %p125 = pnand %p123, %p124
    %p126 = pneg %p125
    // Predicated region
    $region25: #{tpu_custom_call.1} parent=5 // pred_check
      _
    $region26: #{tpu_custom_call.1} parent=5 // pred_check_branch
      %128 = sbr.rel (%p125) target = $region28
    $region27: #{tpu_custom_call.1} parent=5 // pred_region
      %s129 = ssub.s32 %s8, 1
      %s130 = smul.u32 16, %s13
      %p131 = scmp.lt.s32.totalorder %s130, 47
      %s132 = scalar_select %p131, %s130, 47
      %s133 = smul.addr %s132, 8
      %s134 = scalar_lea.vmem %s0, %s133
      %p135 = pneg %p34
      %p136 = pneg %p31
      %s137 = smul.u32 16, %s13
      %p138 = scmp.lt.s32.totalorder %s137, 47
      %s139 = scalar_select %p138, %s137, 47
      %s140 = smul.addr %s139, 8
      %s141 = scalar_lea.vmem %s1, %s140
      %p142 = pneg %p60
      %p143 = pneg %p57
      %p144 = pneg %p86
      %p145 = pneg %p83
      %s146 = smul.u32 16, %s13
      %p147 = scmp.lt.s32.totalorder %s146, 47
      %s148 = scalar_select %p147, %s146, 47
      %s149 = smul.addr %s148, 8
      %s150 = scalar_lea.vmem %s2, %s149
      %s151 = smul.u32 16, %s13
      %p152 = scmp.lt.s32.totalorder %s151, 47
      %s153 = scalar_select %p152, %s151, 47
      %s154 = smul.addr %s153, 8
      %s155 = scalar_lea.vmem %s0, %s154
      %s156 = smul.u32 16, %s13
      %s157 = smul.u32 16, %s13
      %p158 = scmp.lt.s32.totalorder %s157, 47
      %s159 = scalar_select %p158, %s157, 47
      %s160 = smul.addr %s159, 8
      %s161 = scalar_lea.vmem %s1, %s160
      %s162 = smul.u32 16, %s13
      %s163 = smul.u32 16, %s13
      %p164 = scmp.lt.s32.totalorder %s163, 47
      %s165 = scalar_select %p164, %s163, 47
      %s166 = smul.addr %s165, 8
      %s167 = scalar_lea.vmem %s2, %s166
      %s168 = smul.u32 16, %s13
      %v169 = vld [vmem:[%s155] sm:$0xff]
      %v170 = vld [vmem:[%s155 + $0x8] sm:$0xff]
      %v171 = vld [vmem:[%s155 + $0x10] sm:$0xff]
      %v172 = vld [vmem:[%s155 + $0x18] sm:$0xff]
      %v173 = vld [vmem:[%s155 + $0x20] sm:$0xff]
      %v174 = vld [vmem:[%s155 + $0x28] sm:$0xff]
      %v175 = vld [vmem:[%s155 + $0x30] sm:$0xff]
      %v176 = vld [vmem:[%s155 + $0x38] sm:$0xff]
      %v177 = vld [vmem:[%s155 + $0x40] sm:$0xff]
      %v178 = vld [vmem:[%s155 + $0x48] sm:$0xff]
      %v179 = vld [vmem:[%s155 + $0x50] sm:$0xff]
      %v180 = vld [vmem:[%s155 + $0x58] sm:$0xff]
      %v181 = vld [vmem:[%s155 + $0x60] sm:$0xff]
      %v182 = vld [vmem:[%s155 + $0x68] sm:$0xff]
      %v183 = vld [vmem:[%s155 + $0x70] sm:$0xff]
      %v184 = vld [vmem:[%s155 + $0x78] sm:$0xff]
      %v185 = vld [vmem:[%s161] sm:$0xff]
      %v186 = vld [vmem:[%s161 + $0x8] sm:$0xff]
      %v187 = vld [vmem:[%s161 + $0x10] sm:$0xff]
      %v188 = vld [vmem:[%s161 + $0x18] sm:$0xff]
      %v189 = vld [vmem:[%s161 + $0x20] sm:$0xff]
      %v190 = vld [vmem:[%s161 + $0x28] sm:$0xff]
      %v191 = vld [vmem:[%s161 + $0x30] sm:$0xff]
      %v192 = vld [vmem:[%s161 + $0x38] sm:$0xff]
      %v193 = vld [vmem:[%s161 + $0x40] sm:$0xff]
      %v194 = vld [vmem:[%s161 + $0x48] sm:$0xff]
      %v195 = vld [vmem:[%s161 + $0x50] sm:$0xff]
      %v196 = vld [vmem:[%s161 + $0x58] sm:$0xff]
      %v197 = vld [vmem:[%s161 + $0x60] sm:$0xff]
      %v198 = vld [vmem:[%s161 + $0x68] sm:$0xff]
      %v199 = vld [vmem:[%s161 + $0x70] sm:$0xff]
      %v200 = vld [vmem:[%s161 + $0x78] sm:$0xff]
      %vm201 = vcmask 261120
      %v202 = vsel %vm201, %v169, -inf
      %203 = vmax.xlane.f32.xlu0 %v202
      %v204 = vpop.xlane.xlu0 %203
      %v205 = vsel %vm201, %v170, -inf
      %206 = vmax.xlane.f32.xlu0 %v205
      %v207 = vpop.xlane.xlu0 %206
      %v208 = vsel %vm201, %v171, -inf
      %209 = vmax.xlane.f32.xlu0 %v208
      %v210 = vpop.xlane.xlu0 %209
      %v211 = vsel %vm201, %v172, -inf
      %212 = vmax.xlane.f32.xlu0 %v211
      %v213 = vpop.xlane.xlu0 %212
      %v214 = vsel %vm201, %v173, -inf
      %215 = vmax.xlane.f32.xlu0 %v214
      %v216 = vpop.xlane.xlu0 %215
      %v217 = vsel %vm201, %v174, -inf
      %218 = vmax.xlane.f32.xlu0 %v217
      %v219 = vpop.xlane.xlu0 %218
      %v220 = vsel %vm201, %v175, -inf
      %221 = vmax.xlane.f32.xlu0 %v220
      %v222 = vpop.xlane.xlu0 %221
      %v223 = vsel %vm201, %v176, -inf
      %224 = vmax.xlane.f32.xlu0 %v223
      %v225 = vpop.xlane.xlu0 %224
      %v226 = vsel %vm201, %v177, -inf
      %227 = vmax.xlane.f32.xlu0 %v226
      %v228 = vpop.xlane.xlu0 %227
      %v229 = vsel %vm201, %v178, -inf
      %230 = vmax.xlane.f32.xlu0 %v229
      %v231 = vpop.xlane.xlu0 %230
      %v232 = vsel %vm201, %v179, -inf
      %233 = vmax.xlane.f32.xlu0 %v232
      %v234 = vpop.xlane.xlu0 %233
      %v235 = vsel %vm201, %v180, -inf
      %236 = vmax.xlane.f32.xlu0 %v235
      %v237 = vpop.xlane.xlu0 %236
      %v238 = vsel %vm201, %v181, -inf
      %239 = vmax.xlane.f32.xlu0 %v238
      %v240 = vpop.xlane.xlu0 %239
      %v241 = vsel %vm201, %v182, -inf
      %242 = vmax.xlane.f32.xlu0 %v241
      %v243 = vpop.xlane.xlu0 %242
      %v244 = vsel %vm201, %v183, -inf
      %245 = vmax.xlane.f32.xlu0 %v244
      %v246 = vpop.xlane.xlu0 %245
      %v247 = vsel %vm201, %v184, -inf
      %248 = vmax.xlane.f32.xlu0 %v247
      %v249 = vpop.xlane.xlu0 %248
      %v250 = vsub.f32 %v169, %v204
      %v251 = vsub.f32 %v170, %v207
      %v252 = vsub.f32 %v171, %v210
      %v253 = vsub.f32 %v172, %v213
      %v254 = vsub.f32 %v173, %v216
      %v255 = vsub.f32 %v174, %v219
      %v256 = vsub.f32 %v175, %v222
      %v257 = vsub.f32 %v176, %v225
      %v258 = vsub.f32 %v177, %v228
      %v259 = vsub.f32 %v178, %v231
      %v260 = vsub.f32 %v179, %v234
      %v261 = vsub.f32 %v180, %v237
      %v262 = vsub.f32 %v181, %v240
      %v263 = vsub.f32 %v182, %v243
      %v264 = vsub.f32 %v183, %v246
      %v265 = vsub.f32 %v184, %v249
      %v266 = vmul.f32 %v250, 1.442695
      %v267 = vpow.pop %v266
      %v268 = vmul.f32 %v251, 1.442695
      %v269 = vpow.pop %v268
      %v270 = vmul.f32 %v252, 1.442695
      %v271 = vpow.pop %v270
      %v272 = vmul.f32 %v253, 1.442695
      %v273 = vpow.pop %v272
      %v274 = vmul.f32 %v254, 1.442695
      %v275 = vpow.pop %v274
      %v276 = vmul.f32 %v255, 1.442695
      %v277 = vpow.pop %v276
      %v278 = vmul.f32 %v256, 1.442695
      %v279 = vpow.pop %v278
      %v280 = vmul.f32 %v257, 1.442695
      %v281 = vpow.pop %v280
      %v282 = vmul.f32 %v258, 1.442695
      %v283 = vpow.pop %v282
      %v284 = vmul.f32 %v259, 1.442695
      %v285 = vpow.pop %v284
      %v286 = vmul.f32 %v260, 1.442695
      %v287 = vpow.pop %v286
      %v288 = vmul.f32 %v261, 1.442695
      %v289 = vpow.pop %v288
      %v290 = vmul.f32 %v262, 1.442695
      %v291 = vpow.pop %v290
      %v292 = vmul.f32 %v263, 1.442695
      %v293 = vpow.pop %v292
      %v294 = vmul.f32 %v264, 1.442695
      %v295 = vpow.pop %v294
      %v296 = vmul.f32 %v265, 1.442695
      %v297 = vpow.pop %v296
      %v298 = vsel %vm201, %v267, 0.0
      %299 = vadd.xlane.f32.xlu0 %v298
      %v300 = vpop.xlane.xlu0 %299
      %v301 = vsel %vm201, %v269, 0.0
      %302 = vadd.xlane.f32.xlu0 %v301
      %v303 = vpop.xlane.xlu0 %302
      %v304 = vsel %vm201, %v271, 0.0
      %305 = vadd.xlane.f32.xlu0 %v304
      %v306 = vpop.xlane.xlu0 %305
      %v307 = vsel %vm201, %v273, 0.0
      %308 = vadd.xlane.f32.xlu0 %v307
      %v309 = vpop.xlane.xlu0 %308
      %v310 = vsel %vm201, %v275, 0.0
      %311 = vadd.xlane.f32.xlu0 %v310
      %v312 = vpop.xlane.xlu0 %311
      %v313 = vsel %vm201, %v277, 0.0
      %314 = vadd.xlane.f32.xlu0 %v313
      %v315 = vpop.xlane.xlu0 %314
      %v316 = vsel %vm201, %v279, 0.0
      %317 = vadd.xlane.f32.xlu0 %v316
      %v318 = vpop.xlane.xlu0 %317
      %v319 = vsel %vm201, %v281, 0.0
      %320 = vadd.xlane.f32.xlu0 %v319
      %v321 = vpop.xlane.xlu0 %320
      %v322 = vsel %vm201, %v283, 0.0
      %323 = vadd.xlane.f32.xlu0 %v322
      %v324 = vpop.xlane.xlu0 %323
      %v325 = vsel %vm201, %v285, 0.0
      %326 = vadd.xlane.f32.xlu0 %v325
      %v327 = vpop.xlane.xlu0 %326
      %v328 = vsel %vm201, %v287, 0.0
      %329 = vadd.xlane.f32.xlu0 %v328
      %v330 = vpop.xlane.xlu0 %329
      %v331 = vsel %vm201, %v289, 0.0
      %332 = vadd.xlane.f32.xlu0 %v331
      %v333 = vpop.xlane.xlu0 %332
      %v334 = vsel %vm201, %v291, 0.0
      %335 = vadd.xlane.f32.xlu0 %v334
      %v336 = vpop.xlane.xlu0 %335
      %v337 = vsel %vm201, %v293, 0.0
      %338 = vadd.xlane.f32.xlu0 %v337
      %v339 = vpop.xlane.xlu0 %338
      %v340 = vsel %vm201, %v295, 0.0
      %341 = vadd.xlane.f32.xlu0 %v340
      %v342 = vpop.xlane.xlu0 %341
      %v343 = vsel %vm201, %v297, 0.0
      %344 = vadd.xlane.f32.xlu0 %v343
      %v345 = vpop.xlane.xlu0 %344
      %v346 = vlog2.pop %v300
      %v347 = vmul.f32 %v346, 0.6931472
      %v348 = vlog2.pop %v303
      %v349 = vmul.f32 %v348, 0.6931472
      %v350 = vlog2.pop %v306
      %v351 = vmul.f32 %v350, 0.6931472
      %v352 = vlog2.pop %v309
      %v353 = vmul.f32 %v352, 0.6931472
      %v354 = vlog2.pop %v312
      %v355 = vmul.f32 %v354, 0.6931472
      %v356 = vlog2.pop %v315
      %v357 = vmul.f32 %v356, 0.6931472
      %v358 = vlog2.pop %v318
      %v359 = vmul.f32 %v358, 0.6931472
      %v360 = vlog2.pop %v321
      %v361 = vmul.f32 %v360, 0.6931472
      %v362 = vlog2.pop %v324
      %v363 = vmul.f32 %v362, 0.6931472
      %v364 = vlog2.pop %v327
      %v365 = vmul.f32 %v364, 0.6931472
      %v366 = vlog2.pop %v330
      %v367 = vmul.f32 %v366, 0.6931472
      %v368 = vlog2.pop %v333
      %v369 = vmul.f32 %v368, 0.6931472
      %v370 = vlog2.pop %v336
      %v371 = vmul.f32 %v370, 0.6931472
      %v372 = vlog2.pop %v339
      %v373 = vmul.f32 %v372, 0.6931472
      %v374 = vlog2.pop %v342
      %v375 = vmul.f32 %v374, 0.6931472
      %v376 = vlog2.pop %v345
      %v377 = vmul.f32 %v376, 0.6931472
      %v378 = vlaneseq
      %v379 = vand.u32 %v378, 127
      %380 = vset.pattern.permute.xlu0 0
      %381 = vperm.xlu0 %380, %v185
      %v382 = vpop.permute.xlu0 %381
      %383 = vset.pattern.permute.xlu0 0
      %384 = vperm.xlu0 %383, %v186
      %v385 = vpop.permute.xlu0 %384
      %386 = vset.pattern.permute.xlu0 0
      %387 = vperm.xlu0 %386, %v187
      %v388 = vpop.permute.xlu0 %387
      %389 = vset.pattern.permute.xlu0 0
      %390 = vperm.xlu0 %389, %v188
      %v391 = vpop.permute.xlu0 %390
      %392 = vset.pattern.permute.xlu0 0
      %393 = vperm.xlu0 %392, %v189
      %v394 = vpop.permute.xlu0 %393
      %395 = vset.pattern.permute.xlu0 0
      %396 = vperm.xlu0 %395, %v190
      %v397 = vpop.permute.xlu0 %396
      %398 = vset.pattern.permute.xlu0 0
      %399 = vperm.xlu0 %398, %v191
      %v400 = vpop.permute.xlu0 %399
      %401 = vset.pattern.permute.xlu0 0
      %402 = vperm.xlu0 %401, %v192
      %v403 = vpop.permute.xlu0 %402
      %404 = vset.pattern.permute.xlu0 0
      %405 = vperm.xlu0 %404, %v193
      %v406 = vpop.permute.xlu0 %405
      %407 = vset.pattern.permute.xlu0 0
      %408 = vperm.xlu0 %407, %v194
      %v409 = vpop.permute.xlu0 %408
      %410 = vset.pattern.permute.xlu0 0
      %411 = vperm.xlu0 %410, %v195
      %v412 = vpop.permute.xlu0 %411
      %413 = vset.pattern.permute.xlu0 0
      %414 = vperm.xlu0 %413, %v196
      %v415 = vpop.permute.xlu0 %414
      %416 = vset.pattern.permute.xlu0 0
      %417 = vperm.xlu0 %416, %v197
      %v418 = vpop.permute.xlu0 %417
      %419 = vset.pattern.permute.xlu0 0
      %420 = vperm.xlu0 %419, %v198
      %v421 = vpop.permute.xlu0 %420
      %422 = vset.pattern.permute.xlu0 0
      %423 = vperm.xlu0 %422, %v199
      %v424 = vpop.permute.xlu0 %423
      %425 = vset.pattern.permute.xlu0 0
      %426 = vperm.xlu0 %425, %v200
      %v427 = vpop.permute.xlu0 %426
      %vm428 = vcmp.eq.s32.totalorder %v379, %v382
      %vm429 = vcmp.eq.s32.totalorder %v379, %v385
      %vm430 = vcmp.eq.s32.totalorder %v379, %v388
      %vm431 = vcmp.eq.s32.totalorder %v379, %v391
      %vm432 = vcmp.eq.s32.totalorder %v379, %v394
      %vm433 = vcmp.eq.s32.totalorder %v379, %v397
      %vm434 = vcmp.eq.s32.totalorder %v379, %v400
      %vm435 = vcmp.eq.s32.totalorder %v379, %v403
      %vm436 = vcmp.eq.s32.totalorder %v379, %v406
      %vm437 = vcmp.eq.s32.totalorder %v379, %v409
      %vm438 = vcmp.eq.s32.totalorder %v379, %v412
      %vm439 = vcmp.eq.s32.totalorder %v379, %v415
      %vm440 = vcmp.eq.s32.totalorder %v379, %v418
      %vm441 = vcmp.eq.s32.totalorder %v379, %v421
      %vm442 = vcmp.eq.s32.totalorder %v379, %v424
      %vm443 = vcmp.eq.s32.totalorder %v379, %v427
      %v444 = vsel %vm428, %v250, 0.0
      %v445 = vsel %vm429, %v251, 0.0
      %v446 = vsel %vm430, %v252, 0.0
      %v447 = vsel %vm431, %v253, 0.0
      %v448 = vsel %vm432, %v254, 0.0
      %v449 = vsel %vm433, %v255, 0.0
      %v450 = vsel %vm434, %v256, 0.0
      %v451 = vsel %vm435, %v257, 0.0
      %v452 = vsel %vm436, %v258, 0.0
      %v453 = vsel %vm437, %v259, 0.0
      %v454 = vsel %vm438, %v260, 0.0
      %v455 = vsel %vm439, %v261, 0.0
      %v456 = vsel %vm440, %v262, 0.0
      %v457 = vsel %vm441, %v263, 0.0
      %v458 = vsel %vm442, %v264, 0.0
      %v459 = vsel %vm443, %v265, 0.0
      %v460 = vsel %vm201, %v444, 0.0
      %461 = vadd.xlane.f32.xlu0 %v460
      %v462 = vpop.xlane.xlu0 %461
      %v463 = vsel %vm201, %v445, 0.0
      %464 = vadd.xlane.f32.xlu0 %v463
      %v465 = vpop.xlane.xlu0 %464
      %v466 = vsel %vm201, %v446, 0.0
      %467 = vadd.xlane.f32.xlu0 %v466
      %v468 = vpop.xlane.xlu0 %467
      %v469 = vsel %vm201, %v447, 0.0
      %470 = vadd.xlane.f32.xlu0 %v469
      %v471 = vpop.xlane.xlu0 %470
      %v472 = vsel %vm201, %v448, 0.0
      %473 = vadd.xlane.f32.xlu0 %v472
      %v474 = vpop.xlane.xlu0 %473
      %v475 = vsel %vm201, %v449, 0.0
      %476 = vadd.xlane.f32.xlu0 %v475
      %v477 = vpop.xlane.xlu0 %476
      %v478 = vsel %vm201, %v450, 0.0
      %479 = vadd.xlane.f32.xlu0 %v478
      %v480 = vpop.xlane.xlu0 %479
      %v481 = vsel %vm201, %v451, 0.0
      %482 = vadd.xlane.f32.xlu0 %v481
      %v483 = vpop.xlane.xlu0 %482
      %v484 = vsel %vm201, %v452, 0.0
      %485 = vadd.xlane.f32.xlu0 %v484
      %v486 = vpop.xlane.xlu0 %485
      %v487 = vsel %vm201, %v453, 0.0
      %488 = vadd.xlane.f32.xlu0 %v487
      %v489 = vpop.xlane.xlu0 %488
      %v490 = vsel %vm201, %v454, 0.0
      %491 = vadd.xlane.f32.xlu0 %v490
      %v492 = vpop.xlane.xlu0 %491
      %v493 = vsel %vm201, %v455, 0.0
      %494 = vadd.xlane.f32.xlu0 %v493
      %v495 = vpop.xlane.xlu0 %494
      %v496 = vsel %vm201, %v456, 0.0
      %497 = vadd.xlane.f32.xlu0 %v496
      %v498 = vpop.xlane.xlu0 %497
      %v499 = vsel %vm201, %v457, 0.0
      %500 = vadd.xlane.f32.xlu0 %v499
      %v501 = vpop.xlane.xlu0 %500
      %v502 = vsel %vm201, %v458, 0.0
      %503 = vadd.xlane.f32.xlu0 %v502
      %v504 = vpop.xlane.xlu0 %503
      %v505 = vsel %vm201, %v459, 0.0
      %506 = vadd.xlane.f32.xlu0 %v505
      %v507 = vpop.xlane.xlu0 %506
      %v508 = vsub.f32 %v347, %v462
      %v509 = vsub.f32 %v349, %v465
      %v510 = vsub.f32 %v351, %v468
      %v511 = vsub.f32 %v353, %v471
      %v512 = vsub.f32 %v355, %v474
      %v513 = vsub.f32 %v357, %v477
      %v514 = vsub.f32 %v359, %v480
      %v515 = vsub.f32 %v361, %v483
      %v516 = vsub.f32 %v363, %v486
      %v517 = vsub.f32 %v365, %v489
      %v518 = vsub.f32 %v367, %v492
      %v519 = vsub.f32 %v369, %v495
      %v520 = vsub.f32 %v371, %v498
      %v521 = vsub.f32 %v373, %v501
      %v522 = vsub.f32 %v375, %v504
      %v523 = vsub.f32 %v377, %v507
      %v524 = vsub.f32 0.0, %v508
      %v525 = vsub.f32 0.0, %v509
      %v526 = vsub.f32 0.0, %v510
      %v527 = vsub.f32 0.0, %v511
      %v528 = vsub.f32 0.0, %v512
      %v529 = vsub.f32 0.0, %v513
      %v530 = vsub.f32 0.0, %v514
      %v531 = vsub.f32 0.0, %v515
      %v532 = vsub.f32 0.0, %v516
      %v533 = vsub.f32 0.0, %v517
      %v534 = vsub.f32 0.0, %v518
      %v535 = vsub.f32 0.0, %v519
      %v536 = vsub.f32 0.0, %v520
      %v537 = vsub.f32 0.0, %v521
      %v538 = vsub.f32 0.0, %v522
      %v539 = vsub.f32 0.0, %v523
      %v540 = vmul.f32 %v524, 1.442695
      %v541 = vpow.pop %v540
      %v542 = vmul.f32 %v525, 1.442695
      %v543 = vpow.pop %v542
      %v544 = vmul.f32 %v526, 1.442695
      %v545 = vpow.pop %v544
      %v546 = vmul.f32 %v527, 1.442695
      %v547 = vpow.pop %v546
      %v548 = vmul.f32 %v528, 1.442695
      %v549 = vpow.pop %v548
      %v550 = vmul.f32 %v529, 1.442695
      %v551 = vpow.pop %v550
      %v552 = vmul.f32 %v530, 1.442695
      %v553 = vpow.pop %v552
      %v554 = vmul.f32 %v531, 1.442695
      %v555 = vpow.pop %v554
      %v556 = vmul.f32 %v532, 1.442695
      %v557 = vpow.pop %v556
      %v558 = vmul.f32 %v533, 1.442695
      %v559 = vpow.pop %v558
      %v560 = vmul.f32 %v534, 1.442695
      %v561 = vpow.pop %v560
      %v562 = vmul.f32 %v535, 1.442695
      %v563 = vpow.pop %v562
      %v564 = vmul.f32 %v536, 1.442695
      %v565 = vpow.pop %v564
      %v566 = vmul.f32 %v537, 1.442695
      %v567 = vpow.pop %v566
      %v568 = vmul.f32 %v538, 1.442695
      %v569 = vpow.pop %v568
      %v570 = vmul.f32 %v539, 1.442695
      %v571 = vpow.pop %v570
      %v572 = vsub.f32 1.0, %v541
      %v573 = vsub.f32 1.0, %v543
      %v574 = vsub.f32 1.0, %v545
      %v575 = vsub.f32 1.0, %v547
      %v576 = vsub.f32 1.0, %v549
      %v577 = vsub.f32 1.0, %v551
      %v578 = vsub.f32 1.0, %v553
      %v579 = vsub.f32 1.0, %v555
      %v580 = vsub.f32 1.0, %v557
      %v581 = vsub.f32 1.0, %v559
      %v582 = vsub.f32 1.0, %v561
      %v583 = vsub.f32 1.0, %v563
      %v584 = vsub.f32 1.0, %v565
      %v585 = vsub.f32 1.0, %v567
      %v586 = vsub.f32 1.0, %v569
      %v587 = vsub.f32 1.0, %v571
      %v588 = vmax.f32 %v572, 0.0
      %v589 = vmax.f32 %v573, 0.0
      %v590 = vmax.f32 %v574, 0.0
      %v591 = vmax.f32 %v575, 0.0
      %v592 = vmax.f32 %v576, 0.0
      %v593 = vmax.f32 %v577, 0.0
      %v594 = vmax.f32 %v578, 0.0
      %v595 = vmax.f32 %v579, 0.0
      %v596 = vmax.f32 %v580, 0.0
      %v597 = vmax.f32 %v581, 0.0
      %v598 = vmax.f32 %v582, 0.0
      %v599 = vmax.f32 %v583, 0.0
      %v600 = vmax.f32 %v584, 0.0
      %v601 = vmax.f32 %v585, 0.0
      %v602 = vmax.f32 %v586, 0.0
      %v603 = vmax.f32 %v587, 0.0
      %v604 = vmul.f32 %v588, %v588
      %v605 = vmul.f32 %v589, %v589
      %v606 = vmul.f32 %v590, %v590
      %v607 = vmul.f32 %v591, %v591
      %v608 = vmul.f32 %v592, %v592
      %v609 = vmul.f32 %v593, %v593
      %v610 = vmul.f32 %v594, %v594
      %v611 = vmul.f32 %v595, %v595
      %v612 = vmul.f32 %v596, %v596
      %v613 = vmul.f32 %v597, %v597
      %v614 = vmul.f32 %v598, %v598
      %v615 = vmul.f32 %v599, %v599
      %v616 = vmul.f32 %v600, %v600
      %v617 = vmul.f32 %v601, %v601
      %v618 = vmul.f32 %v602, %v602
      %v619 = vmul.f32 %v603, %v603
      %v620 = vmul.f32 %v604, %v508
      %v621 = vmul.f32 %v605, %v509
      %v622 = vmul.f32 %v606, %v510
      %v623 = vmul.f32 %v607, %v511
      %v624 = vmul.f32 %v608, %v512
      %v625 = vmul.f32 %v609, %v513
      %v626 = vmul.f32 %v610, %v514
      %v627 = vmul.f32 %v611, %v515
      %v628 = vmul.f32 %v612, %v516
      %v629 = vmul.f32 %v613, %v517
      %v630 = vmul.f32 %v614, %v518
      %v631 = vmul.f32 %v615, %v519
      %v632 = vmul.f32 %v616, %v520
      %v633 = vmul.f32 %v617, %v521
      %v634 = vmul.f32 %v618, %v522
      %v635 = vmul.f32 %v619, %v523
      %vm636 = vcmask 7168
      %637 = vst.msk [vmem:[%s167] sm:$0xff] %vm636, %v620
      %638 = vst.msk [vmem:[%s167 + $0x8] sm:$0xff] %vm636, %v621
      %639 = vst.msk [vmem:[%s167 + $0x10] sm:$0xff] %vm636, %v622
      %640 = vst.msk [vmem:[%s167 + $0x18] sm:$0xff] %vm636, %v623
      %641 = vst.msk [vmem:[%s167 + $0x20] sm:$0xff] %vm636, %v624
      %642 = vst.msk [vmem:[%s167 + $0x28] sm:$0xff] %vm636, %v625
      %643 = vst.msk [vmem:[%s167 + $0x30] sm:$0xff] %vm636, %v626
      %644 = vst.msk [vmem:[%s167 + $0x38] sm:$0xff] %vm636, %v627
      %645 = vst.msk [vmem:[%s167 + $0x40] sm:$0xff] %vm636, %v628
      %646 = vst.msk [vmem:[%s167 + $0x48] sm:$0xff] %vm636, %v629
      %647 = vst.msk [vmem:[%s167 + $0x50] sm:$0xff] %vm636, %v630
      %648 = vst.msk [vmem:[%s167 + $0x58] sm:$0xff] %vm636, %v631
      %649 = vst.msk [vmem:[%s167 + $0x60] sm:$0xff] %vm636, %v632
      %650 = vst.msk [vmem:[%s167 + $0x68] sm:$0xff] %vm636, %v633
      %651 = vst.msk [vmem:[%s167 + $0x70] sm:$0xff] %vm636, %v634
      %652 = vst.msk [vmem:[%s167 + $0x78] sm:$0xff] %vm636, %v635
      %s653 = smul.u32 16, %s13
      %p654 = scmp.lt.s32.totalorder %s653, 47
      %s655 = scalar_select %p654, %s653, 47
      %s656 = smul.addr %s655, 8
      %s657 = scalar_lea.vmem %s2, %s656
      // Predicated region
      $region29: #{tpu_custom_call.1} parent=27 // pred_check
        %p658 = pneg %p83
      $region30: #{tpu_custom_call.1} parent=27 // pred_check_branch
        %660 = sbr.rel (%p658) target = $region32
      $region31: #{tpu_custom_call.1} parent=27 // pred_region
        %s661 = smul.u32 16, %s13
      $region32: #{tpu_custom_call.1} parent=27 // pred_fallthru
        _
    $region28: #{tpu_custom_call.1} parent=5 // pred_fallthru
      _
    %p662 = scmp.le.s32.totalorder 2, %s8
    // Predicated region
    $region33: #{tpu_custom_call.1} parent=5 // pred_check
      %p663 = pneg %p662
    $region34: #{tpu_custom_call.1} parent=5 // pred_check_branch
      %665 = sbr.rel (%p663) target = $region36
    $region35: #{tpu_custom_call.1} parent=5 // pred_region
      %s666 = ssub.s32 %s8, 2
      // Predicated region
      $region37: #{tpu_custom_call.1} parent=35 // pred_check
        %p667 = pneg %p89
      $region38: #{tpu_custom_call.1} parent=35 // pred_check_branch
        %669 = sbr.rel (%p667) target = $region40
      $region39: #{tpu_custom_call.1} parent=35 // pred_region
        %s670 = smul.u32 16, %s14
        %p671 = scmp.lt.s32.totalorder %s670, 47
        %s672 = scalar_select %p671, %s670, 47
        %s673 = smul.addr %s672, 8
        %s674 = scalar_lea.vmem %s2, %s673
      $region40: #{tpu_custom_call.1} parent=35 // pred_fallthru
        _
    $region36: #{tpu_custom_call.1} parent=5 // pred_fallthru
      _
  $region6: #{tpu_custom_call.1} parent=0 // loop_footer
    %s12 = sadd.s32 1, %s8
  $region7: #{tpu_custom_call.1} parent=0 // loop_footer_branch
    %7 = sbr.rel target = $region3
  $region8: #{tpu_custom_call.1} parent=0 // loop_exit
    _

</llo_original>
